<compile_context>
chip_gen: v7x
topology: tpu7x:2x2x1
jax: 0.10.0
libtpu: 0.0.40
codegen_flags: <defaults>
</compile_context>

<pallas_src>
import functools

import jax
import jax.numpy as jnp
from jax.experimental import pallas as pl
from jax.experimental.pallas import tpu as pltpu

_LANE = 128
_MAX_BLOCK_ROWS = 2048       # 1 MiB f32 per input block per buffer.
_VMEM_LIMIT_BYTES = 32 << 20  # plenty for 6-12 MiB of buffers + temporaries,
                              # and within physical VMEM on v5e/v6e/v7x.


def _num_tensorcores():
    """Best-effort TensorCores-per-chip (2 on v7x, 1 on v5e/v6e)."""
    try:
        kind = jax.devices()[0].device_kind.lower()
        if "v7" in kind:
            return 2
    except Exception:
        pass
    return 1


def _imap_loss_kernel(*refs, is_euclidean, blocks_per_core, block_rows,
                      valid_rows, two_axis):
    if is_euclidean:
        term_ref, pred_ref, dirs_ref, out_ref = refs
    else:
        term_ref, pred_ref, out_ref = refs

    if two_axis:
        c = pl.program_id(0)      # TensorCore / parallel axis
        i = pl.program_id(1)      # reduction axis (sequential per core)
    else:
        c = 0
        i = pl.program_id(0)

    @pl.when(i == 0)
    def _init():
        out_ref[...] = jnp.zeros_like(out_ref)

    term = term_ref[...].astype(jnp.float32)
    if is_euclidean:
        term = term * dirs_ref[...].astype(jnp.float32)
    diff = term - pred_ref[...].astype(jnp.float32)
    sq = diff * diff

    def accumulate(contrib):
        # (block_rows,128) -> (8,128) with pure vreg-wise VPU adds; the single
        # cross-lane reduction happens once, in the wrapper.
        partial = contrib.reshape(block_rows // 8, 8, _LANE).sum(axis=0)
        out_ref[...] += partial[None, :, :]

    # Logical (UNCLAMPED) first global row of this block.  Only the ragged
    # trailing block and the clamped duplicate block (2nd core, blk >= G) can
    # contain rows >= valid_rows, so gate the row mask off the hot path.
    row0 = (c * blocks_per_core + i) * block_rows
    needs_row_mask = row0 + block_rows > valid_rows

    @pl.when(jnp.logical_not(needs_row_mask))
    def _hot():
        accumulate(jnp.where(term > 0, sq, jnp.float32(0.0)))

    @pl.when(needs_row_mask)
    def _edge():
        # Sublane-only iota; broadcast against term inside the compare.  Rows
        # at/past valid_rows are stale VMEM or duplicate data; jnp.where
        # (select, not multiply) guarantees garbage NaN/Inf cannot leak.
        rows = jax.lax.broadcasted_iota(jnp.int32, (block_rows, 1), 0) + row0
        valid = (rows < valid_rows) & (term > 0)
        accumulate(jnp.where(valid, sq, jnp.float32(0.0)))


def imap_loss(termination_depth, predicted_depth, directions_norm, *,
              is_euclidean: bool = False,
              max_block_rows: int = _MAX_BLOCK_ROWS,
              num_cores=None):
    """Returns a 0-d f32 scalar, matching the PyTorch module's output."""
    n = termination_depth.size

    raw = [termination_depth, predicted_depth]
    if is_euclidean:
        raw.append(directions_norm)        # never prepped / DMA'd when unused

    def native_dtype(x):
        if x.dtype in (jnp.dtype(jnp.float32), jnp.dtype(jnp.bfloat16)):
            return x.dtype
        return jnp.dtype(jnp.float32)

    # Sublane granularity: 16 if any input is streamed as a 16-bit dtype.
    gran = 16 if any(native_dtype(x).itemsize == 2 for x in raw) else 8
    unit = _LANE * gran
    n_pad = ((n + unit - 1) // unit) * unit
    R = n_pad // _LANE                      # rows, always a multiple of `gran`

    def prep(x):
        # astype is a no-op (no copy) for f32/bf16 inputs; ravel and the
        # (R,128) reshape of contiguous data are free.  The only real HBM
        # copy is the zero-pad, and it only happens when n is not already
        # (128*gran)-aligned (typical ray-batch sizes are aligned).
        # TODO(synk): a truly copy-free ragged tail needs a manual-DMA
        # (memory_space=pl.ANY) path; a prefix slice copies just as much as
        # the pad at a custom-call boundary, so it is not done here.
        x = jnp.ravel(x).astype(native_dtype(x))
        if n_pad != n:
            x = jnp.pad(x, (0, n_pad - n))  # zeros -> killed by depth>0 mask
        return x.reshape(R, _LANE)

    inputs = [prep(x) for x in raw]

    if num_cores is None:
        num_cores = _num_tensorcores()
    num_cores = max(1, int(num_cores))

    tr = min((max(max_block_rows, gran) // gran) * gran, R)   # block rows
    G = (R + tr - 1) // tr                     # total row-blocks
    bpc = (G + num_cores - 1) // num_cores     # blocks per core
    two_axis = num_cores > 1

    if two_axis:
        grid = (num_cores, bpc)

        def in_map(c, i):
            return (jnp.minimum(c * bpc + i, G - 1), 0)  # clamp: never fully OOB

        out_map = lambda c, i: (c, 0, 0)
        semantics = ("parallel", "arbitrary")
    else:
        grid = (G,)
        in_map = lambda i: (i, 0)
        out_map = lambda i: (0, 0, 0)
        semantics = ("arbitrary",)

    kernel = functools.partial(
        _imap_loss_kernel, is_euclidean=is_euclidean, blocks_per_core=bpc,
        block_rows=tr, valid_rows=R, two_axis=two_axis)

    in_bytes = sum(int(x.size) * x.dtype.itemsize for x in inputs)
    out_bytes = num_cores * 8 * _LANE * 4
    cost = pl.CostEstimate(flops=(6 if is_euclidean else 5) * n,
                           transcendentals=0,
                           bytes_accessed=in_bytes + out_bytes)

    partials = pl.pallas_call(
        kernel,
        out_shape=jax.ShapeDtypeStruct((num_cores, 8, _LANE), jnp.float32),
        grid_spec=pltpu.PrefetchScalarGridSpec(
            num_scalar_prefetch=0,
            grid=grid,
            in_specs=[pl.BlockSpec((tr, _LANE), in_map) for _ in inputs],
            out_specs=pl.BlockSpec((1, 8, _LANE), out_map),
        ),
        compiler_params=pltpu.CompilerParams(
            dimension_semantics=semantics,
            vmem_limit_bytes=_VMEM_LIMIT_BYTES),
        cost_estimate=cost,
    )(*inputs)

    # The only cross-lane reduction: tiny (num_cores,8,128)->scalar, in XLA.
    return jnp.sum(partials) / jnp.float32(n)


def _reference(term, pred, dirs, is_euclidean=False):
    term = term.astype(jnp.float32)
    pred = pred.astype(jnp.float32)
    dirs = dirs.astype(jnp.float32)
    if is_euclidean:
        term = term * dirs
    mask = (term > 0).astype(jnp.float32)
    return jnp.mean((term - pred) ** 2 * mask)


if __name__ == "__main__":
    key = jax.random.PRNGKey(0)
    k1, k2, k3, k4 = jax.random.split(key, 4)

    def make(shape, dtype):
        term = jax.random.uniform(k1, shape, jnp.float32, 0.0, 4.0)
        drop = jax.random.bernoulli(k4, 0.3, shape)
        term = jnp.where(drop, 0.0, term).astype(dtype)
        pred = jax.random.uniform(k2, shape, jnp.float32, 0.0, 4.0).astype(dtype)
        dirs = jax.random.uniform(k3, shape, jnp.float32, 0.9, 1.2).astype(dtype)
        return term, pred, dirs

    cases = [
        # (batch shape, dtype, is_euclidean, max_block_rows, num_cores)
        ((2, 300, 1), jnp.float32, False, _MAX_BLOCK_ROWS, None),  # pad path
        ((2, 300, 1), jnp.float32, True, _MAX_BLOCK_ROWS, None),   # euclidean
        ((40, 128, 1), jnp.float32, True, 8, 2),    # 2-core axis, clamped dup
        ((40, 128, 1), jnp.float32, False, 16, 1),  # ragged trailing block
        ((16, 128, 1), jnp.bfloat16, False, _MAX_BLOCK_ROWS, None),  # bf16
    ]
    for shape, dtype, eucl, mbr, cores in cases:
        term, pred, dirs = make(shape, dtype)
        got = imap_loss(term, pred, dirs, is_euclidean=eucl,
                        max_block_rows=mbr, num_cores=cores)
        got = jax.block_until_ready(got)
        want = _reference(term, pred, dirs, is_euclidean=eucl)
        assert jnp.allclose(got, want, rtol=1e-5, atol=1e-6), (
            shape, dtype, eucl, float(got), float(want))

    print("KERNEL_OK")
</pallas_src>

<mosaic_0001>
module attributes {stable_mosaic.version = 11 : i64} {
  func.func @_imap_loss_kernel(%arg0: i32, %arg1: memref<8x128xf32, #tpu.memory_space<vmem>>, %arg2: memref<8x128xf32, #tpu.memory_space<vmem>>, %arg3: memref<1x8x128xf32, #tpu.memory_space<vmem>>) attributes {dimension_semantics = [#tpu.dimension_semantics<arbitrary>], iteration_bounds = array<i64: 1>, scalar_prefetch = 0 : i64, scratch_operands = 0 : i64, tpu.core_type = #tpu.core_type<tc>, window_params = [{transform_indices = @transform_0, window_bounds = array<i64: 8, 128>}, {transform_indices = @transform_1, window_bounds = array<i64: 8, 128>}, {pipeline_mode = #tpu.pipeline_mode<synchronous>, transform_indices = @transform_2, window_bounds = array<i64: 1, 8, 128>}]} {
    %c0_i32 = arith.constant 0 : i32
    %0 = arith.cmpi eq, %arg0, %c0_i32 : i32
    %1 = arith.extui %0 : i1 to i32
    %c0_i32_0 = arith.constant 0 : i32
    %2 = arith.cmpi ne, %1, %c0_i32_0 : i32
    scf.if %2 {
      %cst = arith.constant 0.000000e+00 : f32
      %16 = vector.broadcast %cst : f32 to vector<1x8x128xf32>
      %c0_9 = arith.constant 0 : index
      %c0_10 = arith.constant 0 : index
      %c0_11 = arith.constant 0 : index
      %17 = vector.load %arg3[%c0_9, %c0_10, %c0_11] : memref<1x8x128xf32, #tpu.memory_space<vmem>>, vector<1x8x128xf32>
      tpu.vector_store %arg3[%c0_9, %c0_10, %c0_11], %16 {strides = array<i32>} : memref<1x8x128xf32, #tpu.memory_space<vmem>>, vector<1x8x128xf32>,
    } else {
    }
    %c0 = arith.constant 0 : index
    %c0_1 = arith.constant 0 : index
    %3 = vector.load %arg1[%c0, %c0_1] : memref<8x128xf32, #tpu.memory_space<vmem>>, vector<8x128xf32>
    %c0_2 = arith.constant 0 : index
    %c0_3 = arith.constant 0 : index
    %4 = vector.load %arg2[%c0_2, %c0_3] : memref<8x128xf32, #tpu.memory_space<vmem>>, vector<8x128xf32>
    %5 = arith.subf %3, %4 : vector<8x128xf32>
    %6 = arith.mulf %5, %5 : vector<8x128xf32>
    %c0_i32_4 = arith.constant 0 : i32
    %7 = arith.addi %c0_i32_4, %arg0 : i32
    %c8_i32 = arith.constant 8 : i32
    %8 = arith.muli %7, %c8_i32 : i32
    %c8_i32_5 = arith.constant 8 : i32
    %9 = arith.addi %8, %c8_i32_5 : i32
    %c8_i32_6 = arith.constant 8 : i32
    %10 = arith.cmpi sgt, %9, %c8_i32_6 : i32
    %true = arith.constant true
    %11 = arith.xori %10, %true : i1
    %12 = arith.extui %11 : i1 to i32
    %c0_i32_7 = arith.constant 0 : i32
    %13 = arith.cmpi ne, %12, %c0_i32_7 : i32
    scf.if %13 {
      %cst = arith.constant 0.000000e+00 : f32
      %16 = vector.broadcast %cst : f32 to vector<8x128xf32>
      %17 = arith.cmpf ogt, %3, %16 : vector<8x128xf32>
      %cst_9 = arith.constant 0.000000e+00 : f32
      %18 = vector.broadcast %cst_9 : f32 to vector<8x128xf32>
      %19 = arith.select %17, %6, %18 : vector<8x128xi1>, vector<8x128xf32>
      %20 = vector.shape_cast %19 : vector<8x128xf32> to vector<1x8x128xf32>
      %cst_10 = arith.constant dense<0.000000e+00> : vector<8x128xf32>
      %21 = vector.multi_reduction <add>, %20, %cst_10 [0] : vector<1x8x128xf32> to vector<8x128xf32>
      %c0_11 = arith.constant 0 : index
      %c0_12 = arith.constant 0 : index
      %c0_13 = arith.constant 0 : index
      %22 = vector.load %arg3[%c0_11, %c0_12, %c0_13] : memref<1x8x128xf32, #tpu.memory_space<vmem>>, vector<1x8x128xf32>
      %23 = vector.shape_cast %21 : vector<8x128xf32> to vector<1x8x128xf32>
      %24 = arith.addf %22, %23 : vector<1x8x128xf32>
      %c0_14 = arith.constant 0 : index
      %c0_15 = arith.constant 0 : index
      %c0_16 = arith.constant 0 : index
      %25 = vector.load %arg3[%c0_14, %c0_15, %c0_16] : memref<1x8x128xf32, #tpu.memory_space<vmem>>, vector<1x8x128xf32>
      tpu.vector_store %arg3[%c0_14, %c0_15, %c0_16], %24 {strides = array<i32>} : memref<1x8x128xf32, #tpu.memory_space<vmem>>, vector<1x8x128xf32>,
    } else {
    }
    %14 = arith.extui %10 : i1 to i32
    %c0_i32_8 = arith.constant 0 : i32
    %15 = arith.cmpi ne, %14, %c0_i32_8 : i32
    scf.if %15 {
      %16 = tpu.iota {dimensions = array<i32: 0>} : vector<8x1xi32>
      %17 = vector.broadcast %8 : i32 to vector<8x1xi32>
      %18 = arith.addi %16, %17 : vector<8x1xi32>
      %c8_i32_9 = arith.constant 8 : i32
      %19 = vector.broadcast %c8_i32_9 : i32 to vector<8x1xi32>
      %20 = arith.cmpi slt, %18, %19 : vector<8x1xi32>
      %cst = arith.constant 0.000000e+00 : f32
      %21 = vector.broadcast %cst : f32 to vector<8x128xf32>
      %22 = arith.cmpf ogt, %3, %21 : vector<8x128xf32>
      %23 = vector.broadcast %20 : vector<8x1xi1> to vector<8x128xi1>
      %24 = arith.andi %23, %22 : vector<8x128xi1>
      %cst_10 = arith.constant 0.000000e+00 : f32
      %25 = vector.broadcast %cst_10 : f32 to vector<8x128xf32>
      %26 = arith.select %24, %6, %25 : vector<8x128xi1>, vector<8x128xf32>
      %27 = vector.shape_cast %26 : vector<8x128xf32> to vector<1x8x128xf32>
      %cst_11 = arith.constant dense<0.000000e+00> : vector<8x128xf32>
      %28 = vector.multi_reduction <add>, %27, %cst_11 [0] : vector<1x8x128xf32> to vector<8x128xf32>
      %c0_12 = arith.constant 0 : index
      %c0_13 = arith.constant 0 : index
      %c0_14 = arith.constant 0 : index
      %29 = vector.load %arg3[%c0_12, %c0_13, %c0_14] : memref<1x8x128xf32, #tpu.memory_space<vmem>>, vector<1x8x128xf32>
      %30 = vector.shape_cast %28 : vector<8x128xf32> to vector<1x8x128xf32>
      %31 = arith.addf %29, %30 : vector<1x8x128xf32>
      %c0_15 = arith.constant 0 : index
      %c0_16 = arith.constant 0 : index
      %c0_17 = arith.constant 0 : index
      %32 = vector.load %arg3[%c0_15, %c0_16, %c0_17] : memref<1x8x128xf32, #tpu.memory_space<vmem>>, vector<1x8x128xf32>
      tpu.vector_store %arg3[%c0_15, %c0_16, %c0_17], %31 {strides = array<i32>} : memref<1x8x128xf32, #tpu.memory_space<vmem>>, vector<1x8x128xf32>,
    } else {
    }
    return
  }
  func.func @transform_0(%arg0: i32) -> (i32, i32) {
    %c0_i32 = arith.constant 0 : i32
    %c0_i32_0 = arith.constant 0 : i32
    return %arg0, %c0_i32 : i32, i32
  }
  func.func @transform_1(%arg0: i32) -> (i32, i32) {
    %c0_i32 = arith.constant 0 : i32
    %c0_i32_0 = arith.constant 0 : i32
    return %arg0, %c0_i32 : i32, i32
  }
  func.func @transform_2(%arg0: i32) -> (i32, i32, i32) {
    %c0_i32 = arith.constant 0 : i32
    %c0_i32_0 = arith.constant 0 : i32
    %c0_i32_1 = arith.constant 0 : i32
    %c0_i32_2 = arith.constant 0 : i32
    return %c0_i32, %c0_i32_0, %c0_i32_1 : i32, i32, i32
  }
}

</mosaic_0001>

<llo_original>
// kernel: tpu_custom_call.1
$region0: #{tpu_custom_call.1}
  #allocation0 [shape = 'u32[]', space=smem, size = 0x4, offset = 0x4, fixed_abs, tag = 'smem constant byte address 0x4 - core index']
  #allocation1 [shape = 'u32[144,128]{1,0:T(1,128)}', space=vmem, size = 0x12000, scoped, tag = 'internal scratch']
  %s0 = inlined_call_operand.hbm [shape: f32[8,128], index: 0, kind: input, shape index: {}]
  %s1 = inlined_call_operand.hbm [shape: f32[8,128], index: 1, kind: input, shape index: {}]
  %s2 = inlined_call_operand.hbm [shape: f32[1,8,128], index: 2, kind: output, shape index: {}]
  %s3 = sld [smem:[#allocation0]]
  $region38: #{tpu_custom_call.1} parent=0
    _
  %s5 = ssub.s32 1, %s3
  %s6 = scalar_select 0, %s5, %s3
  $region1: #{tpu_custom_call.1} parent=0
    #allocation2 [shape = 'u8[4096]{0}', space=vmem, size = 0x1000, scoped, tag = 'input window, operand 0, single buffered']
    #allocation3 [shape = 's32[1]{0}', space=sflag, size = 0x4, scoped, tag = 'scoped memory for tpu_custom_call.1']
    #allocation4 [shape = 's32[1]{0}', space=sflag, size = 0x4, scoped, tag = 'scoped memory for tpu_custom_call.1']
    #allocation5 [shape = 'u8[4096]{0}', space=vmem, size = 0x1000, scoped, tag = 'input window, operand 1, single buffered']
    #allocation6 [shape = 's32[1]{0}', space=sflag, size = 0x4, scoped, tag = 'scoped memory for tpu_custom_call.1']
    #allocation7 [shape = 'u8[4096]{0}', space=vmem, size = 0x1000, scoped, tag = 'output window, operand 0, single buffered']
    %7 = vsyncpa [#allocation3], 0
    %8 = vsyncpa [#allocation6], 0
    %9 = vsyncpa [#allocation4], 0
    // Predicated region
    $region2: #{tpu_custom_call.1} parent=1 // pred_check
      _
    $region3: #{tpu_custom_call.1} parent=1 // pred_check_branch
      %11 = sbr.rel (0) target = $region5
    $region4: #{tpu_custom_call.1} parent=1 // pred_region
      %s13 = ssub.s32 128, 128
      %14 = vsyncadd [#allocation3], %s13
      %s16 = sshll.u32 [#allocation2], 4
      %s17 = int_to_ptr.vmem [resolvable:$true] %s16
      %19 = dma.hbm_to_vmem [thread:$0]  %s0, 128, %s17, [#allocation3]
    $region5: #{tpu_custom_call.1} parent=1 // pred_fallthru
      _
    // Predicated region
    $region6: #{tpu_custom_call.1} parent=1 // pred_check
      _
    $region7: #{tpu_custom_call.1} parent=1 // pred_check_branch
      %21 = sbr.rel (0) target = $region9
    $region8: #{tpu_custom_call.1} parent=1 // pred_region
      %s23 = ssub.s32 128, 128
      %24 = vsyncadd [#allocation6], %s23
      %s26 = sshll.u32 [#allocation5], 4
      %s27 = int_to_ptr.vmem [resolvable:$true] %s26
      %29 = dma.hbm_to_vmem [thread:$0]  %s1, 128, %s27, [#allocation6]
    $region9: #{tpu_custom_call.1} parent=1 // pred_fallthru
      _
    // Predicated region
    $region10: #{tpu_custom_call.1} parent=1 // pred_check
      _
    $region11: #{tpu_custom_call.1} parent=1 // pred_check_branch
      %31 = sbr.rel (0) target = $region13
    $region12: #{tpu_custom_call.1} parent=1 // pred_region
      %32 = dma.done [#allocation3], 128
    $region13: #{tpu_custom_call.1} parent=1 // pred_fallthru
      _
    // Predicated region
    $region14: #{tpu_custom_call.1} parent=1 // pred_check
      _
    $region15: #{tpu_custom_call.1} parent=1 // pred_check_branch
      %34 = sbr.rel (0) target = $region17
    $region16: #{tpu_custom_call.1} parent=1 // pred_region
      %35 = dma.done [#allocation6], 128
    $region17: #{tpu_custom_call.1} parent=1 // pred_fallthru
      _
    %p36 = scmp.eq.s32.totalorder 0, 0
    // Predicated region
    $region18: #{tpu_custom_call.1} parent=1 // pred_check
      %p37 = pneg %p36
    $region19: #{tpu_custom_call.1} parent=1 // pred_check_branch
      %39 = sbr.rel (%p37) target = $region21
    $region20: #{tpu_custom_call.1} parent=1 // pred_region
      %40 = vst [vmem:[#allocation7] sm:$0xff] 0.0
    $region21: #{tpu_custom_call.1} parent=1 // pred_fallthru
      _
    %v41 = vld [vmem:[#allocation2] sm:$0xff]
    %v42 = vld [vmem:[#allocation5] sm:$0xff]
    %v43 = vsub.f32 %v41, %v42
    %v44 = vmul.f32 %v43, %v43
    %s45 = smul.u32 0, 8
    %s46 = sadd.s32 %s45, 8
    %p47 = scmp.gt.s32.totalorder %s46, 8
    %p48 = scmp.le.s32.totalorder %s46, 8
    // Predicated region
    $region22: #{tpu_custom_call.1} parent=1 // pred_check
      %p49 = pneg %p48
    $region23: #{tpu_custom_call.1} parent=1 // pred_check_branch
      %51 = sbr.rel (%p49) target = $region25
    $region24: #{tpu_custom_call.1} parent=1 // pred_region
      %vm52 = vcmp.gt.f32.partialorder %v41, 0.0
      %v53 = vsel %vm52, %v44, 0.0
      %v54 = vadd.f32 %v53, 0.0
      %v55 = vld [vmem:[#allocation7] sm:$0xff]
      %v56 = vadd.f32 %v55, %v54
      %57 = vst [vmem:[#allocation7] sm:$0xff] %v56
    $region25: #{tpu_custom_call.1} parent=1 // pred_fallthru
      _
    // Predicated region
    $region26: #{tpu_custom_call.1} parent=1 // pred_check
      %p58 = pneg %p47
    $region27: #{tpu_custom_call.1} parent=1 // pred_check_branch
      %60 = sbr.rel (%p58) target = $region29
    $region28: #{tpu_custom_call.1} parent=1 // pred_region
      %v61 = vlaneseq
      %v62 = vshrl.u32 %v61, 7
      %v63 = vstv %s45
      %v64 = vadd.s32 %v62, %v63
      %vm65 = vcmp.lt.s32.totalorder %v64, 8
      %vm66 = vcmp.gt.f32.partialorder %v41, 0.0
      %v67 = vsel %vm65, 1, 0
      %vm68 = vcmp.eq.s32.totalorder %v67, 1
      %vm69 = vmand %vm68, %vm66
      %v70 = vsel %vm69, %v44, 0.0
      %v71 = vadd.f32 %v70, 0.0
      %v72 = vld [vmem:[#allocation7] sm:$0xff]
      %v73 = vadd.f32 %v72, %v71
      %74 = vst [vmem:[#allocation7] sm:$0xff] %v73
    $region29: #{tpu_custom_call.1} parent=1 // pred_fallthru
      _
    // Predicated region
    $region30: #{tpu_custom_call.1} parent=1 // pred_check
      _
    $region31: #{tpu_custom_call.1} parent=1 // pred_check_branch
      %76 = sbr.rel (0) target = $region33
    $region32: #{tpu_custom_call.1} parent=1 // pred_region
      %s78 = ssub.s32 128, 128
      %79 = vsyncadd [#allocation4], %s78
      %s81 = sshll.u32 [#allocation7], 4
      %s82 = int_to_ptr.vmem [resolvable:$true] %s81
      %84 = dma.vmem_to_hbm [thread:$0]  %s82, 128, %s2, [#allocation4]
    $region33: #{tpu_custom_call.1} parent=1 // pred_fallthru
      _
    // Predicated region
    $region34: #{tpu_custom_call.1} parent=1 // pred_check
      _
    $region35: #{tpu_custom_call.1} parent=1 // pred_check_branch
      %86 = sbr.rel (0) target = $region37
    $region36: #{tpu_custom_call.1} parent=1 // pred_region
      %87 = dma.done [#allocation4], 128
    $region37: #{tpu_custom_call.1} parent=1 // pred_fallthru
      _
    %88 = vsyncpa [#allocation3], 1
    %89 = vsyncpa [#allocation6], 1
    %90 = vsyncpa [#allocation4], 1

</llo_original>
